<compile_context>
chip_gen: v6e
topology: v6e:2x2x1
jax: 0.10.0
libtpu: 0.0.40
codegen_flags: <defaults>
</compile_context>

<pallas_src>
import functools

import jax
import jax.numpy as jnp
from jax.experimental import pallas as pl
from jax.experimental.pallas import tpu as pltpu

_LANE = 128
_SUBLANE = 8
_SMALL_FALLBACK_BYTES = 64 * 1024      # below this, jnp/XLA fusion wins
_BLOCK_FLOOR_BYTES = 256 * 1024        # don't shrink blocks below ~256 KiB
_VMEM_LIMIT = 32 * 1024 * 1024


def _device_kind():
    try:
        return jax.devices()[0].device_kind.lower()
    except Exception:
        return ""


def _is_v7():
    # v7x is (currently) the only generation with 2 TensorCores per chip.
    return "v7" in _device_kind()


def _target_block_bytes():
    # ~1.3 us/block read at v7x's per-TC HBM bandwidth with 2 MiB blocks ->
    # bump to 4 MiB there; v5e/v6e see no benefit past 2 MiB.
    return (4 if _is_v7() else 2) * 1024 * 1024


def _sublane_pack(itemsize):
    # Rows per native sublane group: 8 for 32-bit, 16 for 16-bit, 32 for 8-bit.
    if itemsize >= 4:
        return _SUBLANE
    return _SUBLANE * (4 // itemsize)


def _choose_block_rows(rows, itemsize, pack, two_tc):
    """Pick a (block_rows, 128) tile: big, pack-aligned, >=2 steps where useful."""
    lane_bytes = _LANE * itemsize
    target = max(pack, (_target_block_bytes() // lane_bytes) // pack * pack)
    floor = max(pack, (_BLOCK_FLOOR_BYTES // lane_bytes) // pack * pack)

    if rows <= target:
        # Whole slab fits in a single block.
        if two_tc and rows >= 2 * floor:
            # Split so both v7x TensorCores stream half (grid axis is "parallel").
            half = -(-rows // 2)
            return max(pack, -(-half // pack) * pack)
        return rows  # block dims == full array dims -> always legal
    # Multiple blocks needed: aim for >=4 pipeline steps, floor ~256 KiB.
    quarter = -(-rows // 4)
    rt = min(target, max(floor, quarter))
    return max(pack, (rt // pack) * pack)


def _clamp_kernel(x_ref, o_ref, *, clamp_min, clamp_max):
    v = x_ref[...]
    if clamp_min is not None:
        v = jnp.maximum(v, jnp.asarray(clamp_min, v.dtype))
    if clamp_max is not None:
        v = jnp.minimum(v, jnp.asarray(clamp_max, v.dtype))
    o_ref[...] = v


def _clip_ref(v, clamp_min, clamp_max):
    # Tiny-input fallback, same semantics as the kernel body (XLA fuses it).
    if clamp_min is not None:
        v = jnp.maximum(v, jnp.asarray(clamp_min, v.dtype))
    if clamp_max is not None:
        v = jnp.minimum(v, jnp.asarray(clamp_max, v.dtype))
    return v


def _compiler_params():
    return pltpu.CompilerParams(
        dimension_semantics=("parallel",),
        vmem_limit_bytes=_VMEM_LIMIT,
    )


def _cost(n, itemsize, clamp_min, clamp_max):
    nbounds = (clamp_min is not None) + (clamp_max is not None)
    return pl.CostEstimate(
        flops=nbounds * n, transcendentals=0, bytes_accessed=2 * n * itemsize
    )


def _clamp_2d(x2d, clamp_min, clamp_max):
    """Lane-aligned fast path: x2d has shape (rows, 128)."""
    rows, lane = x2d.shape
    itemsize = x2d.dtype.itemsize
    pack = _sublane_pack(itemsize)
    rt = _choose_block_rows(rows, itemsize, pack, _is_v7())
    num_blocks = pl.cdiv(rows, rt)
    kernel = functools.partial(
        _clamp_kernel, clamp_min=clamp_min, clamp_max=clamp_max
    )
    return pl.pallas_call(
        kernel,
        out_shape=jax.ShapeDtypeStruct((rows, lane), x2d.dtype),
        grid=(num_blocks,),
        in_specs=[pl.BlockSpec((rt, lane), lambda i: (i, 0))],
        out_specs=pl.BlockSpec((rt, lane), lambda i: (i, 0)),
        compiler_params=_compiler_params(),
        cost_estimate=_cost(rows * lane, itemsize, clamp_min, clamp_max),
    )(x2d)


def _clamp_1d(x1d, clamp_min, clamp_max):
    """Ragged path: 1-D blocks (multiple of 128); Pallas masks the partial tail."""
    (n,) = x1d.shape
    itemsize = x1d.dtype.itemsize
    pack = _sublane_pack(itemsize)
    rows_equiv = pl.cdiv(n, _LANE)
    rt = _choose_block_rows(rows_equiv, itemsize, pack, _is_v7())
    block_elems = rt * _LANE
    num_blocks = pl.cdiv(n, block_elems)
    kernel = functools.partial(
        _clamp_kernel, clamp_min=clamp_min, clamp_max=clamp_max
    )
    return pl.pallas_call(
        kernel,
        out_shape=jax.ShapeDtypeStruct((n,), x1d.dtype),
        grid=(num_blocks,),
        in_specs=[pl.BlockSpec((block_elems,), lambda i: (i,))],
        out_specs=pl.BlockSpec((block_elems,), lambda i: (i,)),
        compiler_params=_compiler_params(),
        cost_estimate=_cost(n, itemsize, clamp_min, clamp_max),
    )(x1d)


def _as_scalar(b):
    if b is None:
        return None
    try:
        return b.item()  # numpy / jax 0-d arrays -> Python scalar
    except AttributeError:
        return b


def clamp(x, clamp_min=None, clamp_max=None):
    """torch.clamp(x, clamp_min, clamp_max) as a Pallas TPU kernel.

    clamp_min / clamp_max are Python scalars, 0-d arrays, or None (module
    config, baked into the kernel like weights).
    """
    clamp_min = _as_scalar(clamp_min)
    clamp_max = _as_scalar(clamp_max)
    if clamp_min is None and clamp_max is None:
        return x

    if jnp.issubdtype(x.dtype, jnp.integer):
        for b in (clamp_min, clamp_max):
            if b is not None and float(b) != int(b):
                raise ValueError(
                    "Fractional clamp bound with an integer input tensor; "
                    "torch.clamp does not silently truncate."
                )

    orig_shape = x.shape
    n = x.size
    if n == 0:
        return x
    if n * x.dtype.itemsize < _SMALL_FALLBACK_BYTES:
        # Launch + DMA overhead dominates for KB-scale inputs: let XLA fuse it.
        return _clip_ref(x, clamp_min, clamp_max)

    x_flat = x.reshape(-1)
    if n % _LANE == 0:
        out = _clamp_2d(
            x_flat.reshape(n // _LANE, _LANE), clamp_min, clamp_max
        )
    else:
        out = _clamp_1d(x_flat, clamp_min, clamp_max)
    return out.reshape(orig_shape)


if __name__ == "__main__":
    key = jax.random.PRNGKey(0)
    k0, k1, k2, k3 = jax.random.split(key, 4)
    clamp_min, clamp_max = -0.5, 0.5

    # 1) Canonical small NCHW input from the test module (8 KiB -> fused fallback).
    x_small = jax.random.normal(k0, (2, 4, 16, 16), dtype=jnp.float32) * 3.0
    out_small = jax.block_until_ready(clamp(x_small, clamp_min, clamp_max))
    assert out_small.shape == x_small.shape and out_small.dtype == x_small.dtype
    assert jnp.allclose(out_small, jnp.clip(x_small, clamp_min, clamp_max))

    # 2) Lane-aligned f32 tensor big enough to hit the 2-D Pallas path (512 KiB).
    x_big = jax.random.normal(k1, (4, 8, 64, 64), dtype=jnp.float32) * 3.0
    out_big = jax.block_until_ready(clamp(x_big, clamp_min, clamp_max))
    assert jnp.allclose(out_big, jnp.clip(x_big, clamp_min, clamp_max))

    # One-sided (None) variants on the kernel path.
    out_min_only = jax.block_until_ready(clamp(x_big, clamp_min, None))
    assert jnp.allclose(out_min_only, jnp.maximum(x_big, clamp_min))
    out_max_only = jax.block_until_ready(clamp(x_big, None, clamp_max))
    assert jnp.allclose(out_max_only, jnp.minimum(x_big, clamp_max))

    # 3) bf16 tensor: exercises the 16-row sublane pack (128 KiB, 2-D path).
    x_bf16 = (jax.random.normal(k2, (4, 64, 256), dtype=jnp.float32) * 3.0
              ).astype(jnp.bfloat16)
    out_bf16 = jax.block_until_ready(clamp(x_bf16, clamp_min, clamp_max))
    assert out_bf16.dtype == jnp.bfloat16
    assert jnp.allclose(
        out_bf16.astype(jnp.float32),
        jnp.clip(x_bf16, clamp_min, clamp_max).astype(jnp.float32),
    )

    # 4) Ragged element count (n % 128 != 0) above the fallback cutoff:
    #    exercises the 1-D masked-partial-block path (no concatenate).
    x_rag = jax.random.normal(k3, (3, 73, 99), dtype=jnp.float32) * 3.0
    out_rag = jax.block_until_ready(clamp(x_rag, clamp_min, clamp_max))
    assert out_rag.shape == x_rag.shape
    assert jnp.allclose(out_rag, jnp.clip(x_rag, clamp_min, clamp_max))

    print("KERNEL_OK")
</pallas_src>

<mosaic_0001>
module attributes {stable_mosaic.version = 11 : i64} {
  func.func @_clamp_kernel(%arg0: i32, %arg1: memref<1024x128xf32, #tpu.memory_space<vmem>>, %arg2: memref<1024x128xf32, #tpu.memory_space<vmem>>) attributes {dimension_semantics = [#tpu.dimension_semantics<parallel>], iteration_bounds = array<i64: 1>, scalar_prefetch = 0 : i64, scratch_operands = 0 : i64, tpu.core_type = #tpu.core_type<tc>, window_params = [{transform_indices = @transform_0, window_bounds = array<i64: 1024, 128>}, {transform_indices = @transform_1, window_bounds = array<i64: 1024, 128>}]} {
    %c0 = arith.constant 0 : index
    %c0_0 = arith.constant 0 : index
    %0 = vector.load %arg1[%c0, %c0_0] : memref<1024x128xf32, #tpu.memory_space<vmem>>, vector<1024x128xf32>
    %cst = arith.constant -5.000000e-01 : f32
    %1 = vector.broadcast %cst : f32 to vector<1024x128xf32>
    %2 = arith.maximumf %0, %1 : vector<1024x128xf32>
    %cst_1 = arith.constant 5.000000e-01 : f32
    %3 = vector.broadcast %cst_1 : f32 to vector<1024x128xf32>
    %4 = arith.minimumf %2, %3 : vector<1024x128xf32>
    %c0_2 = arith.constant 0 : index
    %c0_3 = arith.constant 0 : index
    %5 = vector.load %arg2[%c0_2, %c0_3] : memref<1024x128xf32, #tpu.memory_space<vmem>>, vector<1024x128xf32>
    tpu.vector_store %arg2[%c0_2, %c0_3], %4 {strides = array<i32>} : memref<1024x128xf32, #tpu.memory_space<vmem>>, vector<1024x128xf32>,
    return
  }
  func.func @transform_0(%arg0: i32) -> (i32, i32) {
    %c0_i32 = arith.constant 0 : i32
    %c0_i32_0 = arith.constant 0 : i32
    return %arg0, %c0_i32 : i32, i32
  }
  func.func @transform_1(%arg0: i32) -> (i32, i32) {
    %c0_i32 = arith.constant 0 : i32
    %c0_i32_0 = arith.constant 0 : i32
    return %arg0, %c0_i32 : i32, i32
  }
}

</mosaic_0001>

<llo_original>
// kernel: tpu_custom_call.1
$region0: #{tpu_custom_call.1}
  #allocation0 [shape = 'u32[]', space=smem, size = 0x4, offset = 0x4, fixed_abs, tag = 'smem constant byte address 0x4 - core index']
  #allocation1 [shape = 'u32[144,128]{1,0:T(1,128)}', space=vmem, size = 0x12000, scoped, tag = 'internal scratch']
  %s0 = inlined_call_operand.hbm [shape: f32[1024,128], index: 0, kind: input, shape index: {}]
  %s1 = inlined_call_operand.hbm [shape: f32[1024,128], index: 1, kind: output, shape index: {}]
  %s2 = sld [smem:[#allocation0]]
  $region18: #{tpu_custom_call.1} parent=0
    _
  %s4 = ssub.s32 1, %s2
  %s5 = scalar_select 0, %s4, %s2
  $region1: #{tpu_custom_call.1} parent=0
    #allocation2 [shape = 'u8[524288]{0}', space=vmem, size = 0x80000, scoped, tag = 'input window, operand 0, single buffered']
    #allocation3 [shape = 's32[1]{0}', space=sflag, size = 0x4, scoped, tag = 'scoped memory for tpu_custom_call.1']
    #allocation4 [shape = 's32[1]{0}', space=sflag, size = 0x4, scoped, tag = 'scoped memory for tpu_custom_call.1']
    #allocation5 [shape = 'u8[524288]{0}', space=vmem, size = 0x80000, scoped, tag = 'output window, operand 0, single buffered']
    %6 = vsyncpa [#allocation3], 0
    %7 = vsyncpa [#allocation4], 0
    // Predicated region
    $region2: #{tpu_custom_call.1} parent=1 // pred_check
      _
    $region3: #{tpu_custom_call.1} parent=1 // pred_check_branch
      %9 = sbr.rel (0) target = $region5
    $region4: #{tpu_custom_call.1} parent=1 // pred_region
      %s11 = ssub.s32 16384, 16384
      %12 = vsyncadd [#allocation3], %s11
      %s13 = sshll.u32 [#allocation2], 4
      %s14 = int_to_ptr.vmem [resolvable:$true] %s13
      %19 = dma.hbm_to_vmem [thread:$0]  %s0, 16384, %s14, [#allocation3], 128, 128, 8
    $region5: #{tpu_custom_call.1} parent=1 // pred_fallthru
      _
    // Predicated region
    $region6: #{tpu_custom_call.1} parent=1 // pred_check
      _
    $region7: #{tpu_custom_call.1} parent=1 // pred_check_branch
      %21 = sbr.rel (0) target = $region9
    $region8: #{tpu_custom_call.1} parent=1 // pred_region
      %22 = dma.done [#allocation3], 16384
    $region9: #{tpu_custom_call.1} parent=1 // pred_fallthru
      _
    %v23 = vld [vmem:[#allocation2] sm:$0xff]
    %v24 = vld [vmem:[#allocation2 + $0x8] sm:$0xff]
    %v25 = vld [vmem:[#allocation2 + $0x10] sm:$0xff]
    %v26 = vld [vmem:[#allocation2 + $0x18] sm:$0xff]
    %v27 = vld [vmem:[#allocation2 + $0x20] sm:$0xff]
    %v28 = vld [vmem:[#allocation2 + $0x28] sm:$0xff]
    %v29 = vld [vmem:[#allocation2 + $0x30] sm:$0xff]
    %v30 = vld [vmem:[#allocation2 + $0x38] sm:$0xff]
    %v31 = vld [vmem:[#allocation2 + $0x40] sm:$0xff]
    %v32 = vld [vmem:[#allocation2 + $0x48] sm:$0xff]
    %v33 = vld [vmem:[#allocation2 + $0x50] sm:$0xff]
    %v34 = vld [vmem:[#allocation2 + $0x58] sm:$0xff]
    %v35 = vld [vmem:[#allocation2 + $0x60] sm:$0xff]
    %v36 = vld [vmem:[#allocation2 + $0x68] sm:$0xff]
    %v37 = vld [vmem:[#allocation2 + $0x70] sm:$0xff]
    %v38 = vld [vmem:[#allocation2 + $0x78] sm:$0xff]
    %v39 = vld [vmem:[#allocation2 + $0x80] sm:$0xff]
    %v40 = vld [vmem:[#allocation2 + $0x88] sm:$0xff]
    %v41 = vld [vmem:[#allocation2 + $0x90] sm:$0xff]
    %v42 = vld [vmem:[#allocation2 + $0x98] sm:$0xff]
    %v43 = vld [vmem:[#allocation2 + $0xa0] sm:$0xff]
    %v44 = vld [vmem:[#allocation2 + $0xa8] sm:$0xff]
    %v45 = vld [vmem:[#allocation2 + $0xb0] sm:$0xff]
    %v46 = vld [vmem:[#allocation2 + $0xb8] sm:$0xff]
    %v47 = vld [vmem:[#allocation2 + $0xc0] sm:$0xff]
    %v48 = vld [vmem:[#allocation2 + $0xc8] sm:$0xff]
    %v49 = vld [vmem:[#allocation2 + $0xd0] sm:$0xff]
    %v50 = vld [vmem:[#allocation2 + $0xd8] sm:$0xff]
    %v51 = vld [vmem:[#allocation2 + $0xe0] sm:$0xff]
    %v52 = vld [vmem:[#allocation2 + $0xe8] sm:$0xff]
    %v53 = vld [vmem:[#allocation2 + $0xf0] sm:$0xff]
    %v54 = vld [vmem:[#allocation2 + $0xf8] sm:$0xff]
    %v55 = vld [vmem:[#allocation2 + $0x100] sm:$0xff]
    %v56 = vld [vmem:[#allocation2 + $0x108] sm:$0xff]
    %v57 = vld [vmem:[#allocation2 + $0x110] sm:$0xff]
    %v58 = vld [vmem:[#allocation2 + $0x118] sm:$0xff]
    %v59 = vld [vmem:[#allocation2 + $0x120] sm:$0xff]
    %v60 = vld [vmem:[#allocation2 + $0x128] sm:$0xff]
    %v61 = vld [vmem:[#allocation2 + $0x130] sm:$0xff]
    %v62 = vld [vmem:[#allocation2 + $0x138] sm:$0xff]
    %v63 = vld [vmem:[#allocation2 + $0x140] sm:$0xff]
    %v64 = vld [vmem:[#allocation2 + $0x148] sm:$0xff]
    %v65 = vld [vmem:[#allocation2 + $0x150] sm:$0xff]
    %v66 = vld [vmem:[#allocation2 + $0x158] sm:$0xff]
    %v67 = vld [vmem:[#allocation2 + $0x160] sm:$0xff]
    %v68 = vld [vmem:[#allocation2 + $0x168] sm:$0xff]
    %v69 = vld [vmem:[#allocation2 + $0x170] sm:$0xff]
    %v70 = vld [vmem:[#allocation2 + $0x178] sm:$0xff]
    %v71 = vld [vmem:[#allocation2 + $0x180] sm:$0xff]
    %v72 = vld [vmem:[#allocation2 + $0x188] sm:$0xff]
    %v73 = vld [vmem:[#allocation2 + $0x190] sm:$0xff]
    %v74 = vld [vmem:[#allocation2 + $0x198] sm:$0xff]
    %v75 = vld [vmem:[#allocation2 + $0x1a0] sm:$0xff]
    %v76 = vld [vmem:[#allocation2 + $0x1a8] sm:$0xff]
    %v77 = vld [vmem:[#allocation2 + $0x1b0] sm:$0xff]
    %v78 = vld [vmem:[#allocation2 + $0x1b8] sm:$0xff]
    %v79 = vld [vmem:[#allocation2 + $0x1c0] sm:$0xff]
    %v80 = vld [vmem:[#allocation2 + $0x1c8] sm:$0xff]
    %v81 = vld [vmem:[#allocation2 + $0x1d0] sm:$0xff]
    %v82 = vld [vmem:[#allocation2 + $0x1d8] sm:$0xff]
    %v83 = vld [vmem:[#allocation2 + $0x1e0] sm:$0xff]
    %v84 = vld [vmem:[#allocation2 + $0x1e8] sm:$0xff]
    %v85 = vld [vmem:[#allocation2 + $0x1f0] sm:$0xff]
    %v86 = vld [vmem:[#allocation2 + $0x1f8] sm:$0xff]
    %v87 = vld [vmem:[#allocation2 + $0x200] sm:$0xff]
    %v88 = vld [vmem:[#allocation2 + $0x208] sm:$0xff]
    %v89 = vld [vmem:[#allocation2 + $0x210] sm:$0xff]
    %v90 = vld [vmem:[#allocation2 + $0x218] sm:$0xff]
    %v91 = vld [vmem:[#allocation2 + $0x220] sm:$0xff]
    %v92 = vld [vmem:[#allocation2 + $0x228] sm:$0xff]
    %v93 = vld [vmem:[#allocation2 + $0x230] sm:$0xff]
    %v94 = vld [vmem:[#allocation2 + $0x238] sm:$0xff]
    %v95 = vld [vmem:[#allocation2 + $0x240] sm:$0xff]
    %v96 = vld [vmem:[#allocation2 + $0x248] sm:$0xff]
    %v97 = vld [vmem:[#allocation2 + $0x250] sm:$0xff]
    %v98 = vld [vmem:[#allocation2 + $0x258] sm:$0xff]
    %v99 = vld [vmem:[#allocation2 + $0x260] sm:$0xff]
    %v100 = vld [vmem:[#allocation2 + $0x268] sm:$0xff]
    %v101 = vld [vmem:[#allocation2 + $0x270] sm:$0xff]
    %v102 = vld [vmem:[#allocation2 + $0x278] sm:$0xff]
    %v103 = vld [vmem:[#allocation2 + $0x280] sm:$0xff]
    %v104 = vld [vmem:[#allocation2 + $0x288] sm:$0xff]
    %v105 = vld [vmem:[#allocation2 + $0x290] sm:$0xff]
    %v106 = vld [vmem:[#allocation2 + $0x298] sm:$0xff]
    %v107 = vld [vmem:[#allocation2 + $0x2a0] sm:$0xff]
    %v108 = vld [vmem:[#allocation2 + $0x2a8] sm:$0xff]
    %v109 = vld [vmem:[#allocation2 + $0x2b0] sm:$0xff]
    %v110 = vld [vmem:[#allocation2 + $0x2b8] sm:$0xff]
    %v111 = vld [vmem:[#allocation2 + $0x2c0] sm:$0xff]
    %v112 = vld [vmem:[#allocation2 + $0x2c8] sm:$0xff]
    %v113 = vld [vmem:[#allocation2 + $0x2d0] sm:$0xff]
    %v114 = vld [vmem:[#allocation2 + $0x2d8] sm:$0xff]
    %v115 = vld [vmem:[#allocation2 + $0x2e0] sm:$0xff]
    %v116 = vld [vmem:[#allocation2 + $0x2e8] sm:$0xff]
    %v117 = vld [vmem:[#allocation2 + $0x2f0] sm:$0xff]
    %v118 = vld [vmem:[#allocation2 + $0x2f8] sm:$0xff]
    %v119 = vld [vmem:[#allocation2 + $0x300] sm:$0xff]
    %v120 = vld [vmem:[#allocation2 + $0x308] sm:$0xff]
    %v121 = vld [vmem:[#allocation2 + $0x310] sm:$0xff]
    %v122 = vld [vmem:[#allocation2 + $0x318] sm:$0xff]
    %v123 = vld [vmem:[#allocation2 + $0x320] sm:$0xff]
    %v124 = vld [vmem:[#allocation2 + $0x328] sm:$0xff]
    %v125 = vld [vmem:[#allocation2 + $0x330] sm:$0xff]
    %v126 = vld [vmem:[#allocation2 + $0x338] sm:$0xff]
    %v127 = vld [vmem:[#allocation2 + $0x340] sm:$0xff]
    %v128 = vld [vmem:[#allocation2 + $0x348] sm:$0xff]
    %v129 = vld [vmem:[#allocation2 + $0x350] sm:$0xff]
    %v130 = vld [vmem:[#allocation2 + $0x358] sm:$0xff]
    %v131 = vld [vmem:[#allocation2 + $0x360] sm:$0xff]
    %v132 = vld [vmem:[#allocation2 + $0x368] sm:$0xff]
    %v133 = vld [vmem:[#allocation2 + $0x370] sm:$0xff]
    %v134 = vld [vmem:[#allocation2 + $0x378] sm:$0xff]
    %v135 = vld [vmem:[#allocation2 + $0x380] sm:$0xff]
    %v136 = vld [vmem:[#allocation2 + $0x388] sm:$0xff]
    %v137 = vld [vmem:[#allocation2 + $0x390] sm:$0xff]
    %v138 = vld [vmem:[#allocation2 + $0x398] sm:$0xff]
    %v139 = vld [vmem:[#allocation2 + $0x3a0] sm:$0xff]
    %v140 = vld [vmem:[#allocation2 + $0x3a8] sm:$0xff]
    %v141 = vld [vmem:[#allocation2 + $0x3b0] sm:$0xff]
    %v142 = vld [vmem:[#allocation2 + $0x3b8] sm:$0xff]
    %v143 = vld [vmem:[#allocation2 + $0x3c0] sm:$0xff]
    %v144 = vld [vmem:[#allocation2 + $0x3c8] sm:$0xff]
    %v145 = vld [vmem:[#allocation2 + $0x3d0] sm:$0xff]
    %v146 = vld [vmem:[#allocation2 + $0x3d8] sm:$0xff]
    %v147 = vld [vmem:[#allocation2 + $0x3e0] sm:$0xff]
    %v148 = vld [vmem:[#allocation2 + $0x3e8] sm:$0xff]
    %v149 = vld [vmem:[#allocation2 + $0x3f0] sm:$0xff]
    %v150 = vld [vmem:[#allocation2 + $0x3f8] sm:$0xff]
    %v151 = vmax.f32 %v23, -0.5
    %v152 = vmax.f32 %v24, -0.5
    %v153 = vmax.f32 %v25, -0.5
    %v154 = vmax.f32 %v26, -0.5
    %v155 = vmax.f32 %v27, -0.5
    %v156 = vmax.f32 %v28, -0.5
    %v157 = vmax.f32 %v29, -0.5
    %v158 = vmax.f32 %v30, -0.5
    %v159 = vmax.f32 %v31, -0.5
    %v160 = vmax.f32 %v32, -0.5
    %v161 = vmax.f32 %v33, -0.5
    %v162 = vmax.f32 %v34, -0.5
    %v163 = vmax.f32 %v35, -0.5
    %v164 = vmax.f32 %v36, -0.5
    %v165 = vmax.f32 %v37, -0.5
    %v166 = vmax.f32 %v38, -0.5
    %v167 = vmax.f32 %v39, -0.5
    %v168 = vmax.f32 %v40, -0.5
    %v169 = vmax.f32 %v41, -0.5
    %v170 = vmax.f32 %v42, -0.5
    %v171 = vmax.f32 %v43, -0.5
    %v172 = vmax.f32 %v44, -0.5
    %v173 = vmax.f32 %v45, -0.5
    %v174 = vmax.f32 %v46, -0.5
    %v175 = vmax.f32 %v47, -0.5
    %v176 = vmax.f32 %v48, -0.5
    %v177 = vmax.f32 %v49, -0.5
    %v178 = vmax.f32 %v50, -0.5
    %v179 = vmax.f32 %v51, -0.5
    %v180 = vmax.f32 %v52, -0.5
    %v181 = vmax.f32 %v53, -0.5
    %v182 = vmax.f32 %v54, -0.5
    %v183 = vmax.f32 %v55, -0.5
    %v184 = vmax.f32 %v56, -0.5
    %v185 = vmax.f32 %v57, -0.5
    %v186 = vmax.f32 %v58, -0.5
    %v187 = vmax.f32 %v59, -0.5
    %v188 = vmax.f32 %v60, -0.5
    %v189 = vmax.f32 %v61, -0.5
    %v190 = vmax.f32 %v62, -0.5
    %v191 = vmax.f32 %v63, -0.5
    %v192 = vmax.f32 %v64, -0.5
    %v193 = vmax.f32 %v65, -0.5
    %v194 = vmax.f32 %v66, -0.5
    %v195 = vmax.f32 %v67, -0.5
    %v196 = vmax.f32 %v68, -0.5
    %v197 = vmax.f32 %v69, -0.5
    %v198 = vmax.f32 %v70, -0.5
    %v199 = vmax.f32 %v71, -0.5
    %v200 = vmax.f32 %v72, -0.5
    %v201 = vmax.f32 %v73, -0.5
    %v202 = vmax.f32 %v74, -0.5
    %v203 = vmax.f32 %v75, -0.5
    %v204 = vmax.f32 %v76, -0.5
    %v205 = vmax.f32 %v77, -0.5
    %v206 = vmax.f32 %v78, -0.5
    %v207 = vmax.f32 %v79, -0.5
    %v208 = vmax.f32 %v80, -0.5
    %v209 = vmax.f32 %v81, -0.5
    %v210 = vmax.f32 %v82, -0.5
    %v211 = vmax.f32 %v83, -0.5
    %v212 = vmax.f32 %v84, -0.5
    %v213 = vmax.f32 %v85, -0.5
    %v214 = vmax.f32 %v86, -0.5
    %v215 = vmax.f32 %v87, -0.5
    %v216 = vmax.f32 %v88, -0.5
    %v217 = vmax.f32 %v89, -0.5
    %v218 = vmax.f32 %v90, -0.5
    %v219 = vmax.f32 %v91, -0.5
    %v220 = vmax.f32 %v92, -0.5
    %v221 = vmax.f32 %v93, -0.5
    %v222 = vmax.f32 %v94, -0.5
    %v223 = vmax.f32 %v95, -0.5
    %v224 = vmax.f32 %v96, -0.5
    %v225 = vmax.f32 %v97, -0.5
    %v226 = vmax.f32 %v98, -0.5
    %v227 = vmax.f32 %v99, -0.5
    %v228 = vmax.f32 %v100, -0.5
    %v229 = vmax.f32 %v101, -0.5
    %v230 = vmax.f32 %v102, -0.5
    %v231 = vmax.f32 %v103, -0.5
    %v232 = vmax.f32 %v104, -0.5
    %v233 = vmax.f32 %v105, -0.5
    %v234 = vmax.f32 %v106, -0.5
    %v235 = vmax.f32 %v107, -0.5
    %v236 = vmax.f32 %v108, -0.5
    %v237 = vmax.f32 %v109, -0.5
    %v238 = vmax.f32 %v110, -0.5
    %v239 = vmax.f32 %v111, -0.5
    %v240 = vmax.f32 %v112, -0.5
    %v241 = vmax.f32 %v113, -0.5
    %v242 = vmax.f32 %v114, -0.5
    %v243 = vmax.f32 %v115, -0.5
    %v244 = vmax.f32 %v116, -0.5
    %v245 = vmax.f32 %v117, -0.5
    %v246 = vmax.f32 %v118, -0.5
    %v247 = vmax.f32 %v119, -0.5
    %v248 = vmax.f32 %v120, -0.5
    %v249 = vmax.f32 %v121, -0.5
    %v250 = vmax.f32 %v122, -0.5
    %v251 = vmax.f32 %v123, -0.5
    %v252 = vmax.f32 %v124, -0.5
    %v253 = vmax.f32 %v125, -0.5
    %v254 = vmax.f32 %v126, -0.5
    %v255 = vmax.f32 %v127, -0.5
    %v256 = vmax.f32 %v128, -0.5
    %v257 = vmax.f32 %v129, -0.5
    %v258 = vmax.f32 %v130, -0.5
    %v259 = vmax.f32 %v131, -0.5
    %v260 = vmax.f32 %v132, -0.5
    %v261 = vmax.f32 %v133, -0.5
    %v262 = vmax.f32 %v134, -0.5
    %v263 = vmax.f32 %v135, -0.5
    %v264 = vmax.f32 %v136, -0.5
    %v265 = vmax.f32 %v137, -0.5
    %v266 = vmax.f32 %v138, -0.5
    %v267 = vmax.f32 %v139, -0.5
    %v268 = vmax.f32 %v140, -0.5
    %v269 = vmax.f32 %v141, -0.5
    %v270 = vmax.f32 %v142, -0.5
    %v271 = vmax.f32 %v143, -0.5
    %v272 = vmax.f32 %v144, -0.5
    %v273 = vmax.f32 %v145, -0.5
    %v274 = vmax.f32 %v146, -0.5
    %v275 = vmax.f32 %v147, -0.5
    %v276 = vmax.f32 %v148, -0.5
    %v277 = vmax.f32 %v149, -0.5
    %v278 = vmax.f32 %v150, -0.5
    %v279 = vmin.f32 %v151, 0.5
    %v280 = vmin.f32 %v152, 0.5
    %v281 = vmin.f32 %v153, 0.5
    %v282 = vmin.f32 %v154, 0.5
    %v283 = vmin.f32 %v155, 0.5
    %v284 = vmin.f32 %v156, 0.5
    %v285 = vmin.f32 %v157, 0.5
    %v286 = vmin.f32 %v158, 0.5
    %v287 = vmin.f32 %v159, 0.5
    %v288 = vmin.f32 %v160, 0.5
    %v289 = vmin.f32 %v161, 0.5
    %v290 = vmin.f32 %v162, 0.5
    %v291 = vmin.f32 %v163, 0.5
    %v292 = vmin.f32 %v164, 0.5
    %v293 = vmin.f32 %v165, 0.5
    %v294 = vmin.f32 %v166, 0.5
    %v295 = vmin.f32 %v167, 0.5
    %v296 = vmin.f32 %v168, 0.5
    %v297 = vmin.f32 %v169, 0.5
    %v298 = vmin.f32 %v170, 0.5
    %v299 = vmin.f32 %v171, 0.5
    %v300 = vmin.f32 %v172, 0.5
    %v301 = vmin.f32 %v173, 0.5
    %v302 = vmin.f32 %v174, 0.5
    %v303 = vmin.f32 %v175, 0.5
    %v304 = vmin.f32 %v176, 0.5
    %v305 = vmin.f32 %v177, 0.5
    %v306 = vmin.f32 %v178, 0.5
    %v307 = vmin.f32 %v179, 0.5
    %v308 = vmin.f32 %v180, 0.5
    %v309 = vmin.f32 %v181, 0.5
    %v310 = vmin.f32 %v182, 0.5
    %v311 = vmin.f32 %v183, 0.5
    %v312 = vmin.f32 %v184, 0.5
    %v313 = vmin.f32 %v185, 0.5
    %v314 = vmin.f32 %v186, 0.5
    %v315 = vmin.f32 %v187, 0.5
    %v316 = vmin.f32 %v188, 0.5
    %v317 = vmin.f32 %v189, 0.5
    %v318 = vmin.f32 %v190, 0.5
    %v319 = vmin.f32 %v191, 0.5
    %v320 = vmin.f32 %v192, 0.5
    %v321 = vmin.f32 %v193, 0.5
    %v322 = vmin.f32 %v194, 0.5
    %v323 = vmin.f32 %v195, 0.5
    %v324 = vmin.f32 %v196, 0.5
    %v325 = vmin.f32 %v197, 0.5
    %v326 = vmin.f32 %v198, 0.5
    %v327 = vmin.f32 %v199, 0.5
    %v328 = vmin.f32 %v200, 0.5
    %v329 = vmin.f32 %v201, 0.5
    %v330 = vmin.f32 %v202, 0.5
    %v331 = vmin.f32 %v203, 0.5
    %v332 = vmin.f32 %v204, 0.5
    %v333 = vmin.f32 %v205, 0.5
    %v334 = vmin.f32 %v206, 0.5
    %v335 = vmin.f32 %v207, 0.5
    %v336 = vmin.f32 %v208, 0.5
    %v337 = vmin.f32 %v209, 0.5
    %v338 = vmin.f32 %v210, 0.5
    %v339 = vmin.f32 %v211, 0.5
    %v340 = vmin.f32 %v212, 0.5
    %v341 = vmin.f32 %v213, 0.5
    %v342 = vmin.f32 %v214, 0.5
    %v343 = vmin.f32 %v215, 0.5
    %v344 = vmin.f32 %v216, 0.5
    %v345 = vmin.f32 %v217, 0.5
    %v346 = vmin.f32 %v218, 0.5
    %v347 = vmin.f32 %v219, 0.5
    %v348 = vmin.f32 %v220, 0.5
    %v349 = vmin.f32 %v221, 0.5
    %v350 = vmin.f32 %v222, 0.5
    %v351 = vmin.f32 %v223, 0.5
    %v352 = vmin.f32 %v224, 0.5
    %v353 = vmin.f32 %v225, 0.5
    %v354 = vmin.f32 %v226, 0.5
    %v355 = vmin.f32 %v227, 0.5
    %v356 = vmin.f32 %v228, 0.5
    %v357 = vmin.f32 %v229, 0.5
    %v358 = vmin.f32 %v230, 0.5
    %v359 = vmin.f32 %v231, 0.5
    %v360 = vmin.f32 %v232, 0.5
    %v361 = vmin.f32 %v233, 0.5
    %v362 = vmin.f32 %v234, 0.5
    %v363 = vmin.f32 %v235, 0.5
    %v364 = vmin.f32 %v236, 0.5
    %v365 = vmin.f32 %v237, 0.5
    %v366 = vmin.f32 %v238, 0.5
    %v367 = vmin.f32 %v239, 0.5
    %v368 = vmin.f32 %v240, 0.5
    %v369 = vmin.f32 %v241, 0.5
    %v370 = vmin.f32 %v242, 0.5
    %v371 = vmin.f32 %v243, 0.5
    %v372 = vmin.f32 %v244, 0.5
    %v373 = vmin.f32 %v245, 0.5
    %v374 = vmin.f32 %v246, 0.5
    %v375 = vmin.f32 %v247, 0.5
    %v376 = vmin.f32 %v248, 0.5
    %v377 = vmin.f32 %v249, 0.5
    %v378 = vmin.f32 %v250, 0.5
    %v379 = vmin.f32 %v251, 0.5
    %v380 = vmin.f32 %v252, 0.5
    %v381 = vmin.f32 %v253, 0.5
    %v382 = vmin.f32 %v254, 0.5
    %v383 = vmin.f32 %v255, 0.5
    %v384 = vmin.f32 %v256, 0.5
    %v385 = vmin.f32 %v257, 0.5
    %v386 = vmin.f32 %v258, 0.5
    %v387 = vmin.f32 %v259, 0.5
    %v388 = vmin.f32 %v260, 0.5
    %v389 = vmin.f32 %v261, 0.5
    %v390 = vmin.f32 %v262, 0.5
    %v391 = vmin.f32 %v263, 0.5
    %v392 = vmin.f32 %v264, 0.5
    %v393 = vmin.f32 %v265, 0.5
    %v394 = vmin.f32 %v266, 0.5
    %v395 = vmin.f32 %v267, 0.5
    %v396 = vmin.f32 %v268, 0.5
    %v397 = vmin.f32 %v269, 0.5
    %v398 = vmin.f32 %v270, 0.5
    %v399 = vmin.f32 %v271, 0.5
    %v400 = vmin.f32 %v272, 0.5
    %v401 = vmin.f32 %v273, 0.5
    %v402 = vmin.f32 %v274, 0.5
    %v403 = vmin.f32 %v275, 0.5
    %v404 = vmin.f32 %v276, 0.5
    %v405 = vmin.f32 %v277, 0.5
    %v406 = vmin.f32 %v278, 0.5
    %407 = vst [vmem:[#allocation5] sm:$0xff] %v279
    %408 = vst [vmem:[#allocation5 + $0x8] sm:$0xff] %v280
    %409 = vst [vmem:[#allocation5 + $0x10] sm:$0xff] %v281
    %410 = vst [vmem:[#allocation5 + $0x18] sm:$0xff] %v282
    %411 = vst [vmem:[#allocation5 + $0x20] sm:$0xff] %v283
    %412 = vst [vmem:[#allocation5 + $0x28] sm:$0xff] %v284
    %413 = vst [vmem:[#allocation5 + $0x30] sm:$0xff] %v285
    %414 = vst [vmem:[#allocation5 + $0x38] sm:$0xff] %v286
    %415 = vst [vmem:[#allocation5 + $0x40] sm:$0xff] %v287
    %416 = vst [vmem:[#allocation5 + $0x48] sm:$0xff] %v288
    %417 = vst [vmem:[#allocation5 + $0x50] sm:$0xff] %v289
    %418 = vst [vmem:[#allocation5 + $0x58] sm:$0xff] %v290
    %419 = vst [vmem:[#allocation5 + $0x60] sm:$0xff] %v291
    %420 = vst [vmem:[#allocation5 + $0x68] sm:$0xff] %v292
    %421 = vst [vmem:[#allocation5 + $0x70] sm:$0xff] %v293
    %422 = vst [vmem:[#allocation5 + $0x78] sm:$0xff] %v294
    %423 = vst [vmem:[#allocation5 + $0x80] sm:$0xff] %v295
    %424 = vst [vmem:[#allocation5 + $0x88] sm:$0xff] %v296
    %425 = vst [vmem:[#allocation5 + $0x90] sm:$0xff] %v297
    %426 = vst [vmem:[#allocation5 + $0x98] sm:$0xff] %v298
    %427 = vst [vmem:[#allocation5 + $0xa0] sm:$0xff] %v299
    %428 = vst [vmem:[#allocation5 + $0xa8] sm:$0xff] %v300
    %429 = vst [vmem:[#allocation5 + $0xb0] sm:$0xff] %v301
    %430 = vst [vmem:[#allocation5 + $0xb8] sm:$0xff] %v302
    %431 = vst [vmem:[#allocation5 + $0xc0] sm:$0xff] %v303
    %432 = vst [vmem:[#allocation5 + $0xc8] sm:$0xff] %v304
    %433 = vst [vmem:[#allocation5 + $0xd0] sm:$0xff] %v305
    %434 = vst [vmem:[#allocation5 + $0xd8] sm:$0xff] %v306
    %435 = vst [vmem:[#allocation5 + $0xe0] sm:$0xff] %v307
    %436 = vst [vmem:[#allocation5 + $0xe8] sm:$0xff] %v308
    %437 = vst [vmem:[#allocation5 + $0xf0] sm:$0xff] %v309
    %438 = vst [vmem:[#allocation5 + $0xf8] sm:$0xff] %v310
    %439 = vst [vmem:[#allocation5 + $0x100] sm:$0xff] %v311
    %440 = vst [vmem:[#allocation5 + $0x108] sm:$0xff] %v312
    %441 = vst [vmem:[#allocation5 + $0x110] sm:$0xff] %v313
    %442 = vst [vmem:[#allocation5 + $0x118] sm:$0xff] %v314
    %443 = vst [vmem:[#allocation5 + $0x120] sm:$0xff] %v315
    %444 = vst [vmem:[#allocation5 + $0x128] sm:$0xff] %v316
    %445 = vst [vmem:[#allocation5 + $0x130] sm:$0xff] %v317
    %446 = vst [vmem:[#allocation5 + $0x138] sm:$0xff] %v318
    %447 = vst [vmem:[#allocation5 + $0x140] sm:$0xff] %v319
    %448 = vst [vmem:[#allocation5 + $0x148] sm:$0xff] %v320
    %449 = vst [vmem:[#allocation5 + $0x150] sm:$0xff] %v321
    %450 = vst [vmem:[#allocation5 + $0x158] sm:$0xff] %v322
    %451 = vst [vmem:[#allocation5 + $0x160] sm:$0xff] %v323
    %452 = vst [vmem:[#allocation5 + $0x168] sm:$0xff] %v324
    %453 = vst [vmem:[#allocation5 + $0x170] sm:$0xff] %v325
    %454 = vst [vmem:[#allocation5 + $0x178] sm:$0xff] %v326
    %455 = vst [vmem:[#allocation5 + $0x180] sm:$0xff] %v327
    %456 = vst [vmem:[#allocation5 + $0x188] sm:$0xff] %v328
    %457 = vst [vmem:[#allocation5 + $0x190] sm:$0xff] %v329
    %458 = vst [vmem:[#allocation5 + $0x198] sm:$0xff] %v330
    %459 = vst [vmem:[#allocation5 + $0x1a0] sm:$0xff] %v331
    %460 = vst [vmem:[#allocation5 + $0x1a8] sm:$0xff] %v332
    %461 = vst [vmem:[#allocation5 + $0x1b0] sm:$0xff] %v333
    %462 = vst [vmem:[#allocation5 + $0x1b8] sm:$0xff] %v334
    %463 = vst [vmem:[#allocation5 + $0x1c0] sm:$0xff] %v335
    %464 = vst [vmem:[#allocation5 + $0x1c8] sm:$0xff] %v336
    %465 = vst [vmem:[#allocation5 + $0x1d0] sm:$0xff] %v337
    %466 = vst [vmem:[#allocation5 + $0x1d8] sm:$0xff] %v338
    %467 = vst [vmem:[#allocation5 + $0x1e0] sm:$0xff] %v339
    %468 = vst [vmem:[#allocation5 + $0x1e8] sm:$0xff] %v340
    %469 = vst [vmem:[#allocation5 + $0x1f0] sm:$0xff] %v341
    %470 = vst [vmem:[#allocation5 + $0x1f8] sm:$0xff] %v342
    %471 = vst [vmem:[#allocation5 + $0x200] sm:$0xff] %v343
    %472 = vst [vmem:[#allocation5 + $0x208] sm:$0xff] %v344
    %473 = vst [vmem:[#allocation5 + $0x210] sm:$0xff] %v345
    %474 = vst [vmem:[#allocation5 + $0x218] sm:$0xff] %v346
    %475 = vst [vmem:[#allocation5 + $0x220] sm:$0xff] %v347
    %476 = vst [vmem:[#allocation5 + $0x228] sm:$0xff] %v348
    %477 = vst [vmem:[#allocation5 + $0x230] sm:$0xff] %v349
    %478 = vst [vmem:[#allocation5 + $0x238] sm:$0xff] %v350
    %479 = vst [vmem:[#allocation5 + $0x240] sm:$0xff] %v351
    %480 = vst [vmem:[#allocation5 + $0x248] sm:$0xff] %v352
    %481 = vst [vmem:[#allocation5 + $0x250] sm:$0xff] %v353
    %482 = vst [vmem:[#allocation5 + $0x258] sm:$0xff] %v354
    %483 = vst [vmem:[#allocation5 + $0x260] sm:$0xff] %v355
    %484 = vst [vmem:[#allocation5 + $0x268] sm:$0xff] %v356
    %485 = vst [vmem:[#allocation5 + $0x270] sm:$0xff] %v357
    %486 = vst [vmem:[#allocation5 + $0x278] sm:$0xff] %v358
    %487 = vst [vmem:[#allocation5 + $0x280] sm:$0xff] %v359
    %488 = vst [vmem:[#allocation5 + $0x288] sm:$0xff] %v360
    %489 = vst [vmem:[#allocation5 + $0x290] sm:$0xff] %v361
    %490 = vst [vmem:[#allocation5 + $0x298] sm:$0xff] %v362
    %491 = vst [vmem:[#allocation5 + $0x2a0] sm:$0xff] %v363
    %492 = vst [vmem:[#allocation5 + $0x2a8] sm:$0xff] %v364
    %493 = vst [vmem:[#allocation5 + $0x2b0] sm:$0xff] %v365
    %494 = vst [vmem:[#allocation5 + $0x2b8] sm:$0xff] %v366
    %495 = vst [vmem:[#allocation5 + $0x2c0] sm:$0xff] %v367
    %496 = vst [vmem:[#allocation5 + $0x2c8] sm:$0xff] %v368
    %497 = vst [vmem:[#allocation5 + $0x2d0] sm:$0xff] %v369
    %498 = vst [vmem:[#allocation5 + $0x2d8] sm:$0xff] %v370
    %499 = vst [vmem:[#allocation5 + $0x2e0] sm:$0xff] %v371
    %500 = vst [vmem:[#allocation5 + $0x2e8] sm:$0xff] %v372
    %501 = vst [vmem:[#allocation5 + $0x2f0] sm:$0xff] %v373
    %502 = vst [vmem:[#allocation5 + $0x2f8] sm:$0xff] %v374
    %503 = vst [vmem:[#allocation5 + $0x300] sm:$0xff] %v375
    %504 = vst [vmem:[#allocation5 + $0x308] sm:$0xff] %v376
    %505 = vst [vmem:[#allocation5 + $0x310] sm:$0xff] %v377
    %506 = vst [vmem:[#allocation5 + $0x318] sm:$0xff] %v378
    %507 = vst [vmem:[#allocation5 + $0x320] sm:$0xff] %v379
    %508 = vst [vmem:[#allocation5 + $0x328] sm:$0xff] %v380
    %509 = vst [vmem:[#allocation5 + $0x330] sm:$0xff] %v381
    %510 = vst [vmem:[#allocation5 + $0x338] sm:$0xff] %v382
    %511 = vst [vmem:[#allocation5 + $0x340] sm:$0xff] %v383
    %512 = vst [vmem:[#allocation5 + $0x348] sm:$0xff] %v384
    %513 = vst [vmem:[#allocation5 + $0x350] sm:$0xff] %v385
    %514 = vst [vmem:[#allocation5 + $0x358] sm:$0xff] %v386
    %515 = vst [vmem:[#allocation5 + $0x360] sm:$0xff] %v387
    %516 = vst [vmem:[#allocation5 + $0x368] sm:$0xff] %v388
    %517 = vst [vmem:[#allocation5 + $0x370] sm:$0xff] %v389
    %518 = vst [vmem:[#allocation5 + $0x378] sm:$0xff] %v390
    %519 = vst [vmem:[#allocation5 + $0x380] sm:$0xff] %v391
    %520 = vst [vmem:[#allocation5 + $0x388] sm:$0xff] %v392
    %521 = vst [vmem:[#allocation5 + $0x390] sm:$0xff] %v393
    %522 = vst [vmem:[#allocation5 + $0x398] sm:$0xff] %v394
    %523 = vst [vmem:[#allocation5 + $0x3a0] sm:$0xff] %v395
    %524 = vst [vmem:[#allocation5 + $0x3a8] sm:$0xff] %v396
    %525 = vst [vmem:[#allocation5 + $0x3b0] sm:$0xff] %v397
    %526 = vst [vmem:[#allocation5 + $0x3b8] sm:$0xff] %v398
    %527 = vst [vmem:[#allocation5 + $0x3c0] sm:$0xff] %v399
    %528 = vst [vmem:[#allocation5 + $0x3c8] sm:$0xff] %v400
    %529 = vst [vmem:[#allocation5 + $0x3d0] sm:$0xff] %v401
    %530 = vst [vmem:[#allocation5 + $0x3d8] sm:$0xff] %v402
    %531 = vst [vmem:[#allocation5 + $0x3e0] sm:$0xff] %v403
    %532 = vst [vmem:[#allocation5 + $0x3e8] sm:$0xff] %v404
    %533 = vst [vmem:[#allocation5 + $0x3f0] sm:$0xff] %v405
    %534 = vst [vmem:[#allocation5 + $0x3f8] sm:$0xff] %v406
    // Predicated region
    $region10: #{tpu_custom_call.1} parent=1 // pred_check
      _
    $region11: #{tpu_custom_call.1} parent=1 // pred_check_branch
      %536 = sbr.rel (0) target = $region13
    $region12: #{tpu_custom_call.1} parent=1 // pred_region
      %s538 = ssub.s32 16384, 16384
      %539 = vsyncadd [#allocation4], %s538
      %s540 = sshll.u32 [#allocation5], 4
      %s541 = int_to_ptr.vmem [resolvable:$true] %s540
      %546 = dma.vmem_to_hbm [thread:$0]  %s541, 16384, %s1, [#allocation4], 128, 128, 8
    $region13: #{tpu_custom_call.1} parent=1 // pred_fallthru
      _
    // Predicated region
    $region14: #{tpu_custom_call.1} parent=1 // pred_check
      _
    $region15: #{tpu_custom_call.1} parent=1 // pred_check_branch
      %548 = sbr.rel (0) target = $region17
    $region16: #{tpu_custom_call.1} parent=1 // pred_region
      %549 = dma.done [#allocation4], 16384
    $region17: #{tpu_custom_call.1} parent=1 // pred_fallthru
      _
    %550 = vsyncpa [#allocation3], 1
    %551 = vsyncpa [#allocation4], 1

</llo_original>
